<compile_context>
chip_gen: v7x
topology: tpu7x:2x2x1
jax: 0.10.0
libtpu: 0.0.40
codegen_flags: <defaults>
</compile_context>

<pallas_src>
import functools

import jax
import jax.numpy as jnp
from jax import lax
from jax.experimental import pallas as pl
from jax.experimental.pallas import tpu as pltpu


_LN_EPS = 1e-5


def _round_up(n, m):
    return ((n + m - 1) // m) * m


def _layernorm_relu(h, gamma, beta, inv_h):
    # Fused-statistics LayerNorm (+ ReLU), all in f32: sum and sum-of-squares
    # are independent lane reductions; var = E[h^2] - mean^2 drops one full
    # [TB,H] subtract from the variance path.
    s = jnp.sum(h, axis=-1, keepdims=True)
    ss = jnp.sum(h * h, axis=-1, keepdims=True)
    mean = s * inv_h
    var = ss * inv_h - mean * mean
    y = (h - mean) * lax.rsqrt(var + _LN_EPS) * gamma + beta
    return jnp.maximum(y, 0.0)


def soft_q_kernel(x_ref, a_ref, w1x_ref, w1a_ref, w2_ref, vecs_ref, o_ref, *,
                  inv_h):
    # Packed per-layer vectors: one [8, H] f32 ref; static slices = free views.
    b1, g1, be1 = vecs_ref[0:1, :], vecs_ref[1:2, :], vecs_ref[2:3, :]
    b2, g2, be2 = vecs_ref[3:4, :], vecs_ref[4:5, :], vecs_ref[5:6, :]
    w3 = vecs_ref[6:7, :]          # final Linear(H,1) weight stored as a row
    b3 = vecs_ref[7:8, 0:1]        # final bias, [1, 1]

    # Cast inputs to bf16 in VMEM so the matmuls ride the full-rate bf16 MXU
    # path (f32 accumulation via preferred_element_type).
    xb = x_ref[...].astype(jnp.bfloat16)
    ab = a_ref[...].astype(jnp.bfloat16)

    # Layer 1: cat[x,a] @ W1 + b1 == x @ W1x + a @ W1a + b1 (concat fused
    # away).  The two tiny-K dots could be merged via a [TB,S+A] staging copy,
    # but layer 2 dominates and the split dots lower most robustly.
    h1 = (jnp.dot(xb, w1x_ref[...], preferred_element_type=jnp.float32)
          + jnp.dot(ab, w1a_ref[...], preferred_element_type=jnp.float32)
          + b1)
    h1 = _layernorm_relu(h1, g1, be1, inv_h)

    # Layer 2: Linear -> LayerNorm -> ReLU (matmul bf16, LN math f32).
    h2 = jnp.dot(h1.astype(jnp.bfloat16), w2_ref[...],
                 preferred_element_type=jnp.float32) + b2
    h2 = _layernorm_relu(h2, g2, be2, inv_h)

    # Layer 3: Linear(H, 1) as a lane reduction; store lane-dense [1, TB].
    q = jnp.sum(h2 * w3, axis=-1)              # [TB]
    o_ref[0] = (q + b3).astype(o_ref.dtype)    # (1,1) + (TB,) -> [1, TB]


def _choose_row_tile(batch):
    """Row tile TB (multiple of 8).  For non-tiny batches force >=2 grid tiles
    (v7x has two TensorCores sharing the 'parallel' axis) and allow tiles up
    to 512 rows so the ~0.35us per-grid-step overhead is amortized (measured
    256->512 moves mem-bound kernels from ~63% to ~85% of HBM roofline on
    v6e).  512 rows of f32 activations also stay well clear of v5e's single
    vector-store slot becoming the bottleneck."""
    if batch <= 16:
        return _round_up(batch, 8)
    return min(512, _round_up(pl.cdiv(batch, 2), 8))


@jax.jit
def soft_q_forward(x, a, params):
    """x: [B, state_dim], a: [B, act_dim] -> q: [B, 1] (float32)."""
    B, S = x.shape
    A = a.shape[1]
    H = params["w2"].shape[0]

    TB = _choose_row_tile(B)
    # cdiv grid with a (possibly) partial last tile: no wrapper-side jnp.pad,
    # so no extra full HBM read+write of the batch.  Rows are independent, so
    # the garbage tail rows of the last tile are computed and sliced off.
    num_tiles = pl.cdiv(B, TB)

    # Constant index_maps keep the weights resident, but the pipeliner still
    # allocates 2 buffers per input by default; single-buffer the weights once
    # they are big enough to matter (halves weight VMEM on v7x's 64 MiB).
    w_bytes = (S * H + A * H + H * H) * params["w2"].dtype.itemsize
    single_buffer_weights = w_bytes > (4 << 20)
    resident_kw = (
        {"pipeline_mode": pl.Buffered(1)} if single_buffer_weights else {})

    # Explicit VMEM budget (the scoped default is only 16/32 MiB): weights
    # (1 or 2 buffers) + vecs + double-buffered x/a/out tiles + activation
    # headroom, with 2x slack, clamped to [16 MiB, 64 MiB] (v7x physical).
    w_buf = 1 if single_buffer_weights else 2
    req = (w_buf * w_bytes
           + 2 * 8 * H * 4
           + 2 * TB * (S + A) * x.dtype.itemsize
           + 2 * TB * 4
           + 6 * TB * H * 4)
    vmem_limit = int(min(64 << 20, max(2 * req, 16 << 20)))

    grid_spec = pltpu.PrefetchScalarGridSpec(
        num_scalar_prefetch=0,
        grid=(num_tiles,),
        in_specs=[
            pl.BlockSpec((TB, S), lambda i: (i, 0)),                 # x tile
            pl.BlockSpec((TB, A), lambda i: (i, 0)),                 # a tile
            pl.BlockSpec((S, H), lambda i: (0, 0), **resident_kw),   # W1x
            pl.BlockSpec((A, H), lambda i: (0, 0), **resident_kw),   # W1a
            pl.BlockSpec((H, H), lambda i: (0, 0), **resident_kw),   # W2
            pl.BlockSpec((8, H), lambda i: (0, 0)),                  # vecs
        ],
        out_specs=pl.BlockSpec((1, 1, TB), lambda i: (i, 0, 0)),
    )

    q_slab = pl.pallas_call(
        functools.partial(soft_q_kernel, inv_h=1.0 / H),
        out_shape=jax.ShapeDtypeStruct((num_tiles, 1, TB), jnp.float32),
        grid_spec=grid_spec,
        compiler_params=pltpu.CompilerParams(
            dimension_semantics=("parallel",),
            vmem_limit_bytes=vmem_limit),
    )(x, a, params["w1x"], params["w1a"], params["w2"], params["vecs"])

    # Lane-dense slab -> [B, 1] (tiles are contiguous batch chunks).
    return q_slab.reshape(num_tiles * TB, 1)[:B]


def init_params(key, state_dim, act_dim, hidden):
    """Matches the PyTorch init: orthogonal(sqrt(2)) weights, zero biases,
    LayerNorm gamma=1 / beta=0.  W1 is stored split & pre-transposed; matmul
    weights are stored in bf16 (full-rate MXU path, half the HBM/VMEM bytes);
    the [H]-sized vectors stay f32 and are packed into one [8, H] array."""
    orth = jax.nn.initializers.orthogonal(scale=float(jnp.sqrt(2.0)))
    k1, k2, k3 = jax.random.split(key, 3)
    d_in = state_dim + act_dim
    w1_t = orth(k1, (hidden, d_in), jnp.float32).T       # [D, H] = W1.T
    w2_t = orth(k2, (hidden, hidden), jnp.float32).T     # [H, H] = W2.T
    w3_row = orth(k3, (1, hidden), jnp.float32)          # [1, H] row of L3
    b3 = jnp.zeros((), jnp.float32)

    zeros = jnp.zeros((hidden,), jnp.float32)
    ones = jnp.ones((hidden,), jnp.float32)
    vecs = jnp.stack(
        [
            zeros,                                  # b1
            ones,                                   # LN1 gamma
            zeros,                                  # LN1 beta
            zeros,                                  # b2
            ones,                                   # LN2 gamma
            zeros,                                  # LN2 beta
            w3_row[0],                              # w3 row
            jnp.full((hidden,), b3, jnp.float32),   # b3 (broadcast row)
        ],
        axis=0,
    )                                               # [8, H] f32

    return {
        "w1x": w1_t[:state_dim].astype(jnp.bfloat16),   # [S, H]
        "w1a": w1_t[state_dim:].astype(jnp.bfloat16),   # [A, H]
        "w2": w2_t.astype(jnp.bfloat16),                # [H, H]
        "vecs": vecs,                                   # [8, H]
    }


def reference_forward(x, a, params):
    """Pure-JAX mirror of the kernel math (bf16 matmul inputs, f32 LN/accum)
    for a correctness check."""
    v = params["vecs"]
    b1, g1, be1 = v[0], v[1], v[2]
    b2, g2, be2 = v[3], v[4], v[5]
    w3, b3 = v[6], v[7, 0]
    inv_h = 1.0 / params["w2"].shape[0]
    xb = x.astype(jnp.bfloat16)
    ab = a.astype(jnp.bfloat16)
    h = (jnp.dot(xb, params["w1x"], preferred_element_type=jnp.float32)
         + jnp.dot(ab, params["w1a"], preferred_element_type=jnp.float32)
         + b1)
    h = _layernorm_relu(h, g1, be1, inv_h)
    h = jnp.dot(h.astype(jnp.bfloat16), params["w2"],
                preferred_element_type=jnp.float32) + b2
    h = _layernorm_relu(h, g2, be2, inv_h)
    return jnp.sum(h * w3, axis=-1, keepdims=True) + b3


if __name__ == "__main__":
    key = jax.random.PRNGKey(0)
    k_x, k_a, k_p = jax.random.split(key, 3)

    batch, state_dim, act_dim, hidden = 8, 12, 4, 32
    x = jax.random.normal(k_x, (batch, state_dim), jnp.float32)
    a = jax.random.normal(k_a, (batch, act_dim), jnp.float32)
    params = init_params(k_p, state_dim, act_dim, hidden)

    q = soft_q_forward(x, a, params)
    jax.block_until_ready(q)

    q_ref = reference_forward(x, a, params)
    assert q.shape == (batch, 1), q.shape
    assert jnp.allclose(q, q_ref, atol=5e-3, rtol=5e-3), (q, q_ref)

    print("KERNEL_OK")
</pallas_src>

<mosaic_0001>
module attributes {stable_mosaic.version = 11 : i64} {
  func.func @soft_q_kernel(%arg0: i32, %arg1: memref<8x12xf32, #tpu.memory_space<vmem>>, %arg2: memref<8x4xf32, #tpu.memory_space<vmem>>, %arg3: memref<12x32xbf16, #tpu.memory_space<vmem>>, %arg4: memref<4x32xbf16, #tpu.memory_space<vmem>>, %arg5: memref<32x32xbf16, #tpu.memory_space<vmem>>, %arg6: memref<8x32xf32, #tpu.memory_space<vmem>>, %arg7: memref<1x1x8xf32, #tpu.memory_space<vmem>>) attributes {dimension_semantics = [#tpu.dimension_semantics<parallel>], iteration_bounds = array<i64: 1>, scalar_prefetch = 0 : i64, scratch_operands = 0 : i64, tpu.core_type = #tpu.core_type<tc>, window_params = [{transform_indices = @transform_0, window_bounds = array<i64: 8, 12>}, {transform_indices = @transform_1, window_bounds = array<i64: 8, 4>}, {pipeline_mode = #tpu.pipeline_mode<synchronous>, transform_indices = @transform_2, window_bounds = array<i64: 12, 32>}, {pipeline_mode = #tpu.pipeline_mode<synchronous>, transform_indices = @transform_3, window_bounds = array<i64: 4, 32>}, {pipeline_mode = #tpu.pipeline_mode<synchronous>, transform_indices = @transform_4, window_bounds = array<i64: 32, 32>}, {pipeline_mode = #tpu.pipeline_mode<synchronous>, transform_indices = @transform_5, window_bounds = array<i64: 8, 32>}, {transform_indices = @transform_6, window_bounds = array<i64: 1, 1, 8>}]} {
    %c0 = arith.constant 0 : index
    %c0_0 = arith.constant 0 : index
    %0 = vector.load %arg6[%c0, %c0_0] : memref<8x32xf32, #tpu.memory_space<vmem>>, vector<1x32xf32>
    %c1 = arith.constant 1 : index
    %c0_1 = arith.constant 0 : index
    %1 = vector.load %arg6[%c1, %c0_1] : memref<8x32xf32, #tpu.memory_space<vmem>>, vector<1x32xf32>
    %c2 = arith.constant 2 : index
    %c0_2 = arith.constant 0 : index
    %2 = vector.load %arg6[%c2, %c0_2] : memref<8x32xf32, #tpu.memory_space<vmem>>, vector<1x32xf32>
    %c3 = arith.constant 3 : index
    %c0_3 = arith.constant 0 : index
    %3 = vector.load %arg6[%c3, %c0_3] : memref<8x32xf32, #tpu.memory_space<vmem>>, vector<1x32xf32>
    %c4 = arith.constant 4 : index
    %c0_4 = arith.constant 0 : index
    %4 = vector.load %arg6[%c4, %c0_4] : memref<8x32xf32, #tpu.memory_space<vmem>>, vector<1x32xf32>
    %c5 = arith.constant 5 : index
    %c0_5 = arith.constant 0 : index
    %5 = vector.load %arg6[%c5, %c0_5] : memref<8x32xf32, #tpu.memory_space<vmem>>, vector<1x32xf32>
    %c6 = arith.constant 6 : index
    %c0_6 = arith.constant 0 : index
    %6 = vector.load %arg6[%c6, %c0_6] : memref<8x32xf32, #tpu.memory_space<vmem>>, vector<1x32xf32>
    %c7 = arith.constant 7 : index
    %c0_7 = arith.constant 0 : index
    %7 = vector.load %arg6[%c7, %c0_7] : memref<8x32xf32, #tpu.memory_space<vmem>>, vector<1x1xf32>
    %c0_8 = arith.constant 0 : index
    %c0_9 = arith.constant 0 : index
    %8 = vector.load %arg1[%c0_8, %c0_9] : memref<8x12xf32, #tpu.memory_space<vmem>>, vector<8x12xf32>
    %9 = arith.truncf %8 : vector<8x12xf32> to vector<8x12xbf16>
    %c0_10 = arith.constant 0 : index
    %c0_11 = arith.constant 0 : index
    %10 = vector.load %arg2[%c0_10, %c0_11] : memref<8x4xf32, #tpu.memory_space<vmem>>, vector<8x4xf32>
    %11 = arith.truncf %10 : vector<8x4xf32> to vector<8x4xbf16>
    %c0_12 = arith.constant 0 : index
    %c0_13 = arith.constant 0 : index
    %12 = vector.load %arg3[%c0_12, %c0_13] : memref<12x32xbf16, #tpu.memory_space<vmem>>, vector<12x32xbf16>
    %cst = arith.constant dense<0.000000e+00> : vector<8x32xf32>
    %13 = tpu.matmul %9, %12, %cst {dimension_numbers = #tpu.dot_dimension_numbers<[1], [0], [0], [1], [0, 0, 1, 1], [], []>} : vector<8x12xbf16>, vector<12x32xbf16>, vector<8x32xf32> -> vector<8x32xf32>
    %c0_14 = arith.constant 0 : index
    %c0_15 = arith.constant 0 : index
    %14 = vector.load %arg4[%c0_14, %c0_15] : memref<4x32xbf16, #tpu.memory_space<vmem>>, vector<4x32xbf16>
    %cst_16 = arith.constant dense<0.000000e+00> : vector<8x32xf32>
    %15 = tpu.matmul %11, %14, %cst_16 {dimension_numbers = #tpu.dot_dimension_numbers<[1], [0], [0], [1], [0, 0, 1, 1], [], []>} : vector<8x4xbf16>, vector<4x32xbf16>, vector<8x32xf32> -> vector<8x32xf32>
    %16 = arith.addf %13, %15 : vector<8x32xf32>
    %17 = vector.broadcast %0 : vector<1x32xf32> to vector<8x32xf32>
    %18 = arith.addf %16, %17 : vector<8x32xf32>
    %cst_17 = arith.constant dense<0.000000e+00> : vector<8xf32>
    %19 = vector.multi_reduction <add>, %18, %cst_17 [1] : vector<8x32xf32> to vector<8xf32>
    %20 = vector.shape_cast %19 : vector<8xf32> to vector<8x1xf32>
    %21 = arith.mulf %18, %18 : vector<8x32xf32>
    %cst_18 = arith.constant dense<0.000000e+00> : vector<8xf32>
    %22 = vector.multi_reduction <add>, %21, %cst_18 [1] : vector<8x32xf32> to vector<8xf32>
    %23 = vector.shape_cast %22 : vector<8xf32> to vector<8x1xf32>
    %cst_19 = arith.constant 3.125000e-02 : f32
    %24 = vector.broadcast %cst_19 : f32 to vector<8x1xf32>
    %25 = arith.mulf %20, %24 : vector<8x1xf32>
    %cst_20 = arith.constant 3.125000e-02 : f32
    %26 = vector.broadcast %cst_20 : f32 to vector<8x1xf32>
    %27 = arith.mulf %23, %26 : vector<8x1xf32>
    %28 = arith.mulf %25, %25 : vector<8x1xf32>
    %29 = arith.subf %27, %28 : vector<8x1xf32>
    %30 = vector.broadcast %25 : vector<8x1xf32> to vector<8x32xf32>
    %31 = arith.subf %18, %30 : vector<8x32xf32>
    %cst_21 = arith.constant 9.99999974E-6 : f32
    %32 = vector.broadcast %cst_21 : f32 to vector<8x1xf32>
    %33 = arith.addf %29, %32 : vector<8x1xf32>
    %34 = math.rsqrt %33 : vector<8x1xf32>
    %35 = vector.broadcast %34 : vector<8x1xf32> to vector<8x32xf32>
    %36 = arith.mulf %31, %35 : vector<8x32xf32>
    %37 = vector.broadcast %1 : vector<1x32xf32> to vector<8x32xf32>
    %38 = arith.mulf %36, %37 : vector<8x32xf32>
    %39 = vector.broadcast %2 : vector<1x32xf32> to vector<8x32xf32>
    %40 = arith.addf %38, %39 : vector<8x32xf32>
    %cst_22 = arith.constant 0.000000e+00 : f32
    %41 = vector.broadcast %cst_22 : f32 to vector<8x32xf32>
    %42 = arith.maximumf %40, %41 : vector<8x32xf32>
    %43 = arith.truncf %42 : vector<8x32xf32> to vector<8x32xbf16>
    %c0_23 = arith.constant 0 : index
    %c0_24 = arith.constant 0 : index
    %44 = vector.load %arg5[%c0_23, %c0_24] : memref<32x32xbf16, #tpu.memory_space<vmem>>, vector<32x32xbf16>
    %cst_25 = arith.constant dense<0.000000e+00> : vector<8x32xf32>
    %45 = tpu.matmul %43, %44, %cst_25 {dimension_numbers = #tpu.dot_dimension_numbers<[1], [0], [0], [1], [0, 0, 1, 1], [], []>} : vector<8x32xbf16>, vector<32x32xbf16>, vector<8x32xf32> -> vector<8x32xf32>
    %46 = vector.broadcast %3 : vector<1x32xf32> to vector<8x32xf32>
    %47 = arith.addf %45, %46 : vector<8x32xf32>
    %cst_26 = arith.constant dense<0.000000e+00> : vector<8xf32>
    %48 = vector.multi_reduction <add>, %47, %cst_26 [1] : vector<8x32xf32> to vector<8xf32>
    %49 = vector.shape_cast %48 : vector<8xf32> to vector<8x1xf32>
    %50 = arith.mulf %47, %47 : vector<8x32xf32>
    %cst_27 = arith.constant dense<0.000000e+00> : vector<8xf32>
    %51 = vector.multi_reduction <add>, %50, %cst_27 [1] : vector<8x32xf32> to vector<8xf32>
    %52 = vector.shape_cast %51 : vector<8xf32> to vector<8x1xf32>
    %cst_28 = arith.constant 3.125000e-02 : f32
    %53 = vector.broadcast %cst_28 : f32 to vector<8x1xf32>
    %54 = arith.mulf %49, %53 : vector<8x1xf32>
    %cst_29 = arith.constant 3.125000e-02 : f32
    %55 = vector.broadcast %cst_29 : f32 to vector<8x1xf32>
    %56 = arith.mulf %52, %55 : vector<8x1xf32>
    %57 = arith.mulf %54, %54 : vector<8x1xf32>
    %58 = arith.subf %56, %57 : vector<8x1xf32>
    %59 = vector.broadcast %54 : vector<8x1xf32> to vector<8x32xf32>
    %60 = arith.subf %47, %59 : vector<8x32xf32>
    %cst_30 = arith.constant 9.99999974E-6 : f32
    %61 = vector.broadcast %cst_30 : f32 to vector<8x1xf32>
    %62 = arith.addf %58, %61 : vector<8x1xf32>
    %63 = math.rsqrt %62 : vector<8x1xf32>
    %64 = vector.broadcast %63 : vector<8x1xf32> to vector<8x32xf32>
    %65 = arith.mulf %60, %64 : vector<8x32xf32>
    %66 = vector.broadcast %4 : vector<1x32xf32> to vector<8x32xf32>
    %67 = arith.mulf %65, %66 : vector<8x32xf32>
    %68 = vector.broadcast %5 : vector<1x32xf32> to vector<8x32xf32>
    %69 = arith.addf %67, %68 : vector<8x32xf32>
    %cst_31 = arith.constant 0.000000e+00 : f32
    %70 = vector.broadcast %cst_31 : f32 to vector<8x32xf32>
    %71 = arith.maximumf %69, %70 : vector<8x32xf32>
    %72 = vector.broadcast %6 : vector<1x32xf32> to vector<8x32xf32>
    %73 = arith.mulf %71, %72 : vector<8x32xf32>
    %cst_32 = arith.constant dense<0.000000e+00> : vector<8xf32>
    %74 = vector.multi_reduction <add>, %73, %cst_32 [1] : vector<8x32xf32> to vector<8xf32>
    %75 = vector.shape_cast %74 : vector<8xf32> to vector<1x8xf32>
    %76 = vector.broadcast %7 : vector<1x1xf32> to vector<1x8xf32>
    %77 = arith.addf %75, %76 : vector<1x8xf32>
    %c0_33 = arith.constant 0 : index
    %c0_34 = arith.constant 0 : index
    %c0_35 = arith.constant 0 : index
    %78 = vector.load %arg7[%c0_33, %c0_34, %c0_35] : memref<1x1x8xf32, #tpu.memory_space<vmem>>, vector<1x1x8xf32>
    %79 = vector.shape_cast %78 : vector<1x1x8xf32> to vector<1x8xf32>
    %80 = vector.shape_cast %77 : vector<1x8xf32> to vector<1x1x8xf32>
    tpu.vector_store %arg7[%c0_33, %c0_34, %c0_35], %80 {strides = array<i32>} : memref<1x1x8xf32, #tpu.memory_space<vmem>>, vector<1x1x8xf32>,
    return
  }
  func.func @transform_0(%arg0: i32) -> (i32, i32) {
    %c0_i32 = arith.constant 0 : i32
    %c0_i32_0 = arith.constant 0 : i32
    return %arg0, %c0_i32 : i32, i32
  }
  func.func @transform_1(%arg0: i32) -> (i32, i32) {
    %c0_i32 = arith.constant 0 : i32
    %c0_i32_0 = arith.constant 0 : i32
    return %arg0, %c0_i32 : i32, i32
  }
  func.func @transform_2(%arg0: i32) -> (i32, i32) {
    %c0_i32 = arith.constant 0 : i32
    %c0_i32_0 = arith.constant 0 : i32
    %c0_i32_1 = arith.constant 0 : i32
    return %c0_i32, %c0_i32_0 : i32, i32
  }
  func.func @transform_3(%arg0: i32) -> (i32, i32) {
    %c0_i32 = arith.constant 0 : i32
    %c0_i32_0 = arith.constant 0 : i32
    %c0_i32_1 = arith.constant 0 : i32
    return %c0_i32, %c0_i32_0 : i32, i32
  }
  func.func @transform_4(%arg0: i32) -> (i32, i32) {
    %c0_i32 = arith.constant 0 : i32
    %c0_i32_0 = arith.constant 0 : i32
    %c0_i32_1 = arith.constant 0 : i32
    return %c0_i32, %c0_i32_0 : i32, i32
  }
  func.func @transform_5(%arg0: i32) -> (i32, i32) {
    %c0_i32 = arith.constant 0 : i32
    %c0_i32_0 = arith.constant 0 : i32
    %c0_i32_1 = arith.constant 0 : i32
    return %c0_i32, %c0_i32_0 : i32, i32
  }
  func.func @transform_6(%arg0: i32) -> (i32, i32, i32) {
    %c0_i32 = arith.constant 0 : i32
    %c0_i32_0 = arith.constant 0 : i32
    %c0_i32_1 = arith.constant 0 : i32
    return %arg0, %c0_i32, %c0_i32_0 : i32, i32, i32
  }
}

</mosaic_0001>

<llo_original>
// kernel: soft_q_forward.1
$region0: #{soft_q_forward.1}
  #allocation0 [shape = 'u32[]', space=smem, size = 0x4, offset = 0x4, fixed_abs, tag = 'smem constant byte address 0x4 - core index']
  #allocation1 [shape = 'u32[144,128]{1,0:T(1,128)}', space=vmem, size = 0x12000, scoped, tag = 'internal scratch']
  %s0 = inlined_call_operand.vmem [shape: f32[8,12], index: 0, kind: input, shape index: {}]
  %s1 = inlined_call_operand.vmem [shape: f32[8,4], index: 1, kind: input, shape index: {}]
  %s2 = inlined_call_operand.hbm [shape: bf16[12,32], index: 2, kind: input, shape index: {}]
  %s3 = inlined_call_operand.vmem [shape: bf16[4,32], index: 3, kind: input, shape index: {}]
  %s4 = inlined_call_operand.vmem [shape: bf16[32,32], index: 4, kind: input, shape index: {}]
  %s5 = inlined_call_operand.hbm [shape: f32[8,32], index: 5, kind: input, shape index: {}]
  %s6 = inlined_call_operand.hbm [shape: f32[1,1,8], index: 6, kind: output, shape index: {}]
  %s7 = sld [smem:[#allocation0]]
  $region42: #{soft_q_forward.1} parent=0
    _
  %s9 = ssub.s32 1, %s7
  %s10 = scalar_select 0, %s9, %s7
  $region1: #{soft_q_forward.1} parent=0
    #allocation2 [shape = 'u8[4096]{0}', space=vmem, size = 0x1000, scoped, tag = 'input window, operand 2, single buffered']
    #allocation3 [shape = 's32[1]{0}', space=sflag, size = 0x4, scoped, tag = 'scoped memory for soft_q_forward.1']
    #allocation4 [shape = 's32[1]{0}', space=sflag, size = 0x4, scoped, tag = 'scoped memory for soft_q_forward.1']
    #allocation5 [shape = 'u8[4096]{0}', space=vmem, size = 0x1000, scoped, tag = 'input window, operand 5, single buffered']
    #allocation6 [shape = 's32[1]{0}', space=sflag, size = 0x4, scoped, tag = 'scoped memory for soft_q_forward.1']
    #allocation7 [shape = 'u8[512]{0}', space=vmem, size = 0x400, scoped, tag = 'output window, operand 0, single buffered']
    %11 = vsyncpa [#allocation3], 0
    %12 = vsyncpa [#allocation6], 0
    %13 = vsyncpa [#allocation4], 0
    // Predicated region
    $region2: #{soft_q_forward.1} parent=1 // pred_check
      _
    $region3: #{soft_q_forward.1} parent=1 // pred_check_branch
      %15 = sbr.rel (0) target = $region5
    $region4: #{soft_q_forward.1} parent=1 // pred_region
      _
    $region5: #{soft_q_forward.1} parent=1 // pred_fallthru
      _
    // Predicated region
    $region6: #{soft_q_forward.1} parent=1 // pred_check
      _
    $region7: #{soft_q_forward.1} parent=1 // pred_check_branch
      %17 = sbr.rel (0) target = $region9
    $region8: #{soft_q_forward.1} parent=1 // pred_region
      _
    $region9: #{soft_q_forward.1} parent=1 // pred_fallthru
      _
    // Predicated region
    $region10: #{soft_q_forward.1} parent=1 // pred_check
      _
    $region11: #{soft_q_forward.1} parent=1 // pred_check_branch
      %19 = sbr.rel (0) target = $region13
    $region12: #{soft_q_forward.1} parent=1 // pred_region
      %s21 = ssub.s32 128, 128
      %22 = vsyncadd [#allocation3], %s21
      %s23 = sshll.u32 [#allocation2], 4
      %s24 = int_to_ptr.vmem [resolvable:$true] %s23
      %29 = dma.hbm_to_vmem [thread:$0]  %s2, 128, %s24, [#allocation3], 64, 64, 4
    $region13: #{soft_q_forward.1} parent=1 // pred_fallthru
      _
    // Predicated region
    $region14: #{soft_q_forward.1} parent=1 // pred_check
      _
    $region15: #{soft_q_forward.1} parent=1 // pred_check_branch
      %31 = sbr.rel (0) target = $region17
    $region16: #{soft_q_forward.1} parent=1 // pred_region
      _
    $region17: #{soft_q_forward.1} parent=1 // pred_fallthru
      _
    // Predicated region
    $region18: #{soft_q_forward.1} parent=1 // pred_check
      _
    $region19: #{soft_q_forward.1} parent=1 // pred_check_branch
      %33 = sbr.rel (0) target = $region21
    $region20: #{soft_q_forward.1} parent=1 // pred_region
      _
    $region21: #{soft_q_forward.1} parent=1 // pred_fallthru
      _
    // Predicated region
    $region22: #{soft_q_forward.1} parent=1 // pred_check
      _
    $region23: #{soft_q_forward.1} parent=1 // pred_check_branch
      %35 = sbr.rel (0) target = $region25
    $region24: #{soft_q_forward.1} parent=1 // pred_region
      %s37 = ssub.s32 128, 128
      %38 = vsyncadd [#allocation6], %s37
      %s40 = sshll.u32 [#allocation5], 4
      %s41 = int_to_ptr.vmem [resolvable:$true] %s40
      %43 = dma.hbm_to_vmem [thread:$0]  %s5, 128, %s41, [#allocation6]
    $region25: #{soft_q_forward.1} parent=1 // pred_fallthru
      _
    // Predicated region
    $region26: #{soft_q_forward.1} parent=1 // pred_check
      _
    $region27: #{soft_q_forward.1} parent=1 // pred_check_branch
      %45 = sbr.rel (0) target = $region29
    $region28: #{soft_q_forward.1} parent=1 // pred_region
      %46 = dma.done [#allocation3], 128
    $region29: #{soft_q_forward.1} parent=1 // pred_fallthru
      _
    // Predicated region
    $region30: #{soft_q_forward.1} parent=1 // pred_check
      _
    $region31: #{soft_q_forward.1} parent=1 // pred_check_branch
      %48 = sbr.rel (0) target = $region33
    $region32: #{soft_q_forward.1} parent=1 // pred_region
      %49 = dma.done [#allocation6], 128
    $region33: #{soft_q_forward.1} parent=1 // pred_fallthru
      _
    %v51 = vld [vmem:[#allocation5] sm:$0x1]
    %v52 = vld [vmem:[#allocation5 + $0x1] sm:$0x1]
    %v53 = vld [vmem:[#allocation5 + $0x2] sm:$0x1]
    %v54 = vld [vmem:[#allocation5 + $0x3] sm:$0x1]
    %v55 = vld [vmem:[#allocation5 + $0x4] sm:$0x1]
    %v56 = vld [vmem:[#allocation5 + $0x5] sm:$0x1]
    %v57 = vld [vmem:[#allocation5 + $0x6] sm:$0x1]
    %v58 = vld [vmem:[#allocation5 + $0x7] sm:$0x1]
    %v59 = vld [vmem:[%s0] sm:$0xff]
    %v60 = vpack.c.bf16 %v59, %v59
    %v61 = vld [vmem:[%s1] sm:$0xff]
    %v62 = vpack.c.bf16 %v61, %v61
    %v63 = vld [vmem:[#allocation2] sm:$0xf]
    %v64 = vld [vmem:[#allocation2 + $0x4] sm:$0x3]
    %v65 = vld [vmem:[%s3] sm:$0x3]
    %vm66 = vcmask 31744
    %v68 = vsel %vm66, %v62, 0
    %vm70 = vcmask 1041408
    %v72 = vsel %vm70, %v65, 0
    %74 = vmatprep.subr.bf16.mxu0 0
    %75 = vmatpush1.bf16.msra.mxu0 %v72
    %76 = vmatprep.subr.bf16.mxu0 0
    %77 = vmatpush1.bf16.msra.mxu0 0
    %78 = vmatprep.subr.bf16.mxu0 0
    %79 = vmatpush1.bf16.msra.mxu0 0
    %80 = vmatprep.subr.bf16.mxu0 0
    %81 = vmatpush1.bf16.msra.mxu0 0
    %82 = vmatprep.subr.bf16.mxu0 0
    %83 = vmatpush1.bf16.msra.mxu0 0
    %84 = vmatprep.subr.bf16.mxu0 0
    %85 = vmatpush1.bf16.msra.mxu0 0
    %86 = vmatprep.subr.bf16.mxu0 0
    %87 = vmatpush1.bf16.msra.mxu0 0
    %88 = vmatprep.subr.bf16.mxu0 0
    %89 = vmatpush1.bf16.msra.mxu0 0
    %90 = vmatprep.subr.bf16.mxu0 0
    %91 = vmatpush1.bf16.msra.mxu0 0
    %92 = vmatprep.subr.bf16.mxu0 0
    %93 = vmatpush1.bf16.msra.mxu0 0
    %94 = vmatprep.subr.bf16.mxu0 0
    %95 = vmatpush1.bf16.msra.mxu0 0
    %96 = vmatprep.subr.bf16.mxu0 0
    %97 = vmatpush1.bf16.msra.mxu0 0
    %98 = vmatprep.subr.bf16.mxu0 0
    %99 = vmatpush1.bf16.msra.mxu0 0
    %100 = vmatprep.subr.bf16.mxu0 0
    %101 = vmatpush1.bf16.msra.mxu0 0
    %102 = vmatprep.subr.bf16.mxu0 0
    %103 = vmatpush1.bf16.msra.mxu0 0
    %104 = vmatprep.subr.bf16.mxu0 0
    %105 = vmatpush1.bf16.msra.mxu0 0
    %106 = vmatprep.mubr.bf16.mxu0 0
    %107 = vmatmul.mubr.bf16.gmra.mrb[0].mxu0 %v68
    %v108 = vpop.f32.mrb[0].mxu0
    %v109 = vadd.f32 0.0, %v108
    %v110 = vpop.f32.mrb[0].mxu0
    %v111 = vpop.f32.mrb[0].mxu0
    %v112 = vpop.f32.mrb[0].mxu0
    %113 = vdwg.mxu0
    %v116 = vunpack.c.l.b16 %v63
    %v117 = vunpack.c.l.b16 %v64
    %v118 = vpack.c.b16 %v117, %v116
    %vm119 = vcmask 97280
    %v121 = vsel %vm119, %v60, 0
    %vm123 = vcmask 1045504
    %v125 = vsel %vm123, %v118, 0
    %127 = vmatprep.subr.bf16.mxu0 0
    %128 = vmatpush1.bf16.msra.mxu0 %v125
    %129 = vmatprep.subr.bf16.mxu0 0
    %130 = vmatpush1.bf16.msra.mxu0 0
    %131 = vmatprep.subr.bf16.mxu0 0
    %132 = vmatpush1.bf16.msra.mxu0 0
    %133 = vmatprep.subr.bf16.mxu0 0
    %134 = vmatpush1.bf16.msra.mxu0 0
    %135 = vmatprep.subr.bf16.mxu0 0
    %136 = vmatpush1.bf16.msra.mxu0 0
    %137 = vmatprep.subr.bf16.mxu0 0
    %138 = vmatpush1.bf16.msra.mxu0 0
    %139 = vmatprep.subr.bf16.mxu0 0
    %140 = vmatpush1.bf16.msra.mxu0 0
    %141 = vmatprep.subr.bf16.mxu0 0
    %142 = vmatpush1.bf16.msra.mxu0 0
    %143 = vmatprep.subr.bf16.mxu0 0
    %144 = vmatpush1.bf16.msra.mxu0 0
    %145 = vmatprep.subr.bf16.mxu0 0
    %146 = vmatpush1.bf16.msra.mxu0 0
    %147 = vmatprep.subr.bf16.mxu0 0
    %148 = vmatpush1.bf16.msra.mxu0 0
    %149 = vmatprep.subr.bf16.mxu0 0
    %150 = vmatpush1.bf16.msra.mxu0 0
    %151 = vmatprep.subr.bf16.mxu0 0
    %152 = vmatpush1.bf16.msra.mxu0 0
    %153 = vmatprep.subr.bf16.mxu0 0
    %154 = vmatpush1.bf16.msra.mxu0 0
    %155 = vmatprep.subr.bf16.mxu0 0
    %156 = vmatpush1.bf16.msra.mxu0 0
    %157 = vmatprep.subr.bf16.mxu0 0
    %158 = vmatpush1.bf16.msra.mxu0 0
    %159 = vmatprep.mubr.bf16.mxu0 0
    %160 = vmatmul.mubr.bf16.gmra.mrb[0].mxu0 %v121
    %v161 = vpop.f32.mrb[0].mxu0
    %v162 = vadd.f32 %v109, %v161
    %v163 = vpop.f32.mrb[0].mxu0
    %v164 = vpop.f32.mrb[0].mxu0
    %v165 = vpop.f32.mrb[0].mxu0
    %166 = vdwg.mxu0
    %v167 = vlaneseq
    %v168 = vshrl.u32 %v167, 7
    %v169 = vsub.s32 0, %v168
    %v170 = vrot.slane %v51, %v169
    %v171 = vadd.f32 %v162, %v170
    %vm172 = vcmask 261120
    %v173 = vsel %vm172, %v171, 0.0
    %174 = vadd.xlane.f32.xlu0 %v173
    %v175 = vpop.xlane.xlu0 %174
    %v176 = vmul.f32 %v171, %v171
    %v177 = vsel %vm172, %v176, 0.0
    %178 = vadd.xlane.f32.xlu0 %v177
    %v179 = vpop.xlane.xlu0 %178
    %v180 = vmul.f32 %v175, 0.03125
    %v181 = vmul.f32 %v179, 0.03125
    %v182 = vmul.f32 %v180, %v180
    %v183 = vsub.f32 %v181, %v182
    %v184 = vsub.f32 %v171, %v180
    %v185 = vadd.f32 %v183, 1e-05
    %v186 = vrsqrt.pop %v185
    %v187 = vmul.f32 %v184, %v186
    %v188 = vlaneseq
    %v189 = vshrl.u32 %v188, 7
    %v190 = vsub.s32 0, %v189
    %v191 = vrot.slane %v52, %v190
    %v192 = vmul.f32 %v187, %v191
    %v193 = vlaneseq
    %v194 = vshrl.u32 %v193, 7
    %v195 = vsub.s32 0, %v194
    %v196 = vrot.slane %v53, %v195
    %v197 = vadd.f32 %v192, %v196
    %v198 = vmax.f32 %v197, 0.0
    %v199 = vpack.c.bf16 %v198, %v198
    %v200 = vld [vmem:[%s4] sm:$0xf]
    %v201 = vld [vmem:[%s4 + $0x4] sm:$0xf]
    %v202 = vld [vmem:[%s4 + $0x8] sm:$0xf]
    %v203 = vld [vmem:[%s4 + $0xc] sm:$0xf]
    %v204 = vlaneseq
    %v205 = vshrl.u32 %v204, 7
    %v206 = vsub.s32 0, %v205
    %v207 = vrot.slane %v54, %v206
    %v212 = vunpack.c.l.b16 %v200
    %v213 = vunpack.c.l.b16 %v201
    %v214 = vunpack.c.l.b16 %v202
    %v215 = vunpack.c.l.b16 %v203
    %v216 = vpack.c.b16 %v213, %v212
    %v217 = vpack.c.b16 %v215, %v214
    %v221 = vsel %vm172, %v199, 0
    %223 = vmatprep.subr.bf16.mxu0 0
    %224 = vmatpush1.bf16.msra.mxu0 %v216
    %225 = vmatprep.subr.bf16.mxu0 0
    %226 = vmatpush1.bf16.msra.mxu0 %v217
    %227 = vmatprep.subr.bf16.mxu0 0
    %228 = vmatpush1.bf16.msra.mxu0 0
    %229 = vmatprep.subr.bf16.mxu0 0
    %230 = vmatpush1.bf16.msra.mxu0 0
    %231 = vmatprep.subr.bf16.mxu0 0
    %232 = vmatpush1.bf16.msra.mxu0 0
    %233 = vmatprep.subr.bf16.mxu0 0
    %234 = vmatpush1.bf16.msra.mxu0 0
    %235 = vmatprep.subr.bf16.mxu0 0
    %236 = vmatpush1.bf16.msra.mxu0 0
    %237 = vmatprep.subr.bf16.mxu0 0
    %238 = vmatpush1.bf16.msra.mxu0 0
    %239 = vmatprep.subr.bf16.mxu0 0
    %240 = vmatpush1.bf16.msra.mxu0 0
    %241 = vmatprep.subr.bf16.mxu0 0
    %242 = vmatpush1.bf16.msra.mxu0 0
    %243 = vmatprep.subr.bf16.mxu0 0
    %244 = vmatpush1.bf16.msra.mxu0 0
    %245 = vmatprep.subr.bf16.mxu0 0
    %246 = vmatpush1.bf16.msra.mxu0 0
    %247 = vmatprep.subr.bf16.mxu0 0
    %248 = vmatpush1.bf16.msra.mxu0 0
    %249 = vmatprep.subr.bf16.mxu0 0
    %250 = vmatpush1.bf16.msra.mxu0 0
    %251 = vmatprep.subr.bf16.mxu0 0
    %252 = vmatpush1.bf16.msra.mxu0 0
    %253 = vmatprep.subr.bf16.mxu0 0
    %254 = vmatpush1.bf16.msra.mxu0 0
    %255 = vmatprep.mubr.bf16.mxu0 0
    %256 = vmatmul.mubr.bf16.gmra.mrb[0].mxu0 %v221
    %v257 = vpop.f32.mrb[0].mxu0
    %v258 = vadd.f32 %v207, %v257
    %v259 = vpop.f32.mrb[0].mxu0
    %v260 = vpop.f32.mrb[0].mxu0
    %v261 = vpop.f32.mrb[0].mxu0
    %262 = vdwg.mxu0
    %v263 = vsel %vm172, %v258, 0.0
    %264 = vadd.xlane.f32.xlu0 %v263
    %v265 = vpop.xlane.xlu0 %264
    %v266 = vmul.f32 %v258, %v258
    %v267 = vsel %vm172, %v266, 0.0
    %268 = vadd.xlane.f32.xlu0 %v267
    %v269 = vpop.xlane.xlu0 %268
    %v270 = vmul.f32 %v265, 0.03125
    %v271 = vmul.f32 %v269, 0.03125
    %v272 = vmul.f32 %v270, %v270
    %v273 = vsub.f32 %v271, %v272
    %v274 = vsub.f32 %v258, %v270
    %v275 = vadd.f32 %v273, 1e-05
    %v276 = vrsqrt.pop %v275
    %v277 = vmul.f32 %v274, %v276
    %v278 = vlaneseq
    %v279 = vshrl.u32 %v278, 7
    %v280 = vsub.s32 0, %v279
    %v281 = vrot.slane %v55, %v280
    %v282 = vmul.f32 %v277, %v281
    %v283 = vlaneseq
    %v284 = vshrl.u32 %v283, 7
    %v285 = vsub.s32 0, %v284
    %v286 = vrot.slane %v56, %v285
    %v287 = vadd.f32 %v282, %v286
    %v288 = vmax.f32 %v287, 0.0
    %v289 = vlaneseq
    %v290 = vshrl.u32 %v289, 7
    %v291 = vsub.s32 0, %v290
    %v292 = vrot.slane %v57, %v291
    %v293 = vmul.f32 %v288, %v292
    %v294 = vsel %vm172, %v293, 0.0
    %295 = vadd.xlane.f32.xlu0 %v294
    %v296 = vpop.xlane.xlu0 %295
    %298 = vset.pattern.permute.xlu0 0
    %299 = vperm.xlu0 %298, %v58
    %v300 = vpop.permute.xlu0 %299
    %v301 = vlaneseq
    %v302 = vshrl.u32 %v301, 7
    %v303 = vsub.s32 0, %v302
    %v304 = vrot.slane %v300, %v303
    %v306 = vadd.f32 %v296, %v304
    %308 = vset.pattern.permute.xlu0 0
    %309 = vperm.xlu0 %308, %v306
    %v310 = vpop.permute.xlu0 %309
    %v311 = vlaneseq
    %v312 = vand.u32 %v311, 127
    %v313 = vlaneseq
    %v314 = vshrl.u32 %v313, 7
    %v315 = vsub.s32 %v312, %v314
    %v316 = vrot.slane %v310, %v315
    %vm318 = vcmask 57344
    %319 = vst.msk [vmem:[#allocation7] sm:$0x1] %vm318, %v316
    // Predicated region
    $region34: #{soft_q_forward.1} parent=1 // pred_check
      _
    $region35: #{soft_q_forward.1} parent=1 // pred_check_branch
      %321 = sbr.rel (0) target = $region37
    $region36: #{soft_q_forward.1} parent=1 // pred_region
      %s323 = ssub.s32 16, 16
      %324 = vsyncadd [#allocation4], %s323
      %s326 = sshll.u32 [#allocation7], 4
      %s327 = int_to_ptr.vmem [resolvable:$true] %s326
      %329 = dma.vmem_to_hbm [thread:$0]  %s327, 16, %s6, [#allocation4]
    $region37: #{soft_q_forward.1} parent=1 // pred_fallthru
      _
    // Predicated region
    $region38: #{soft_q_forward.1} parent=1 // pred_check
      _
    $region39: #{soft_q_forward.1} parent=1 // pred_check_branch
      %331 = sbr.rel (0) target = $region41
    $region40: #{soft_q_forward.1} parent=1 // pred_region
      %332 = dma.done [#allocation4], 16
    $region41: #{soft_q_forward.1} parent=1 // pred_fallthru
      _
    %333 = vsyncpa [#allocation3], 1
    %334 = vsyncpa [#allocation6], 1
    %335 = vsyncpa [#allocation4], 1

</llo_original>
